<compile_context>
chip_gen: v6e
topology: v6e:2x2x1
jax: 0.10.0
libtpu: 0.0.40
codegen_flags: <defaults>
</compile_context>

<pallas_src>
import functools

import jax
import jax.numpy as jnp
from jax.experimental import pallas as pl
from jax.experimental.pallas import tpu as pltpu

LANES = 128
TARGET_BLOCK_ROWS = 8192   # 8192 * 128 * 4 B = 4 MiB per f32 input tile
MAX_ACC_ROWS = 64          # up to 64 independent accumulator rows (breaks the add chain)


def _mse_kernel(p_ref, t_ref, o_ref, *, block_rows, acc_rows, steps, total_rows,
                needs_mask):
    j = pl.program_id(1)   # reduction ("arbitrary") axis

    @pl.when(j == 0)
    def _init():
        o_ref[...] = jnp.zeros_like(o_ref)

    d = p_ref[...].astype(jnp.float32) - t_ref[...].astype(jnp.float32)
    sq = d * d

    def fold(x):
        # (block_rows, 128) -> (acc_rows, 128): splitting the sublane axis keeps the
        # reduce a set of independent elementwise vreg adds on the VPU (no XLU).
        return jnp.sum(x.reshape(block_rows // acc_rows, acc_rows, LANES), axis=0)

    if needs_mask:
        # Tail-only path: only the ragged last block (and any clamped duplicate
        # block on the second slice) pays for the iota/compare/select mask.
        i = pl.program_id(0)
        # int32 row index: fine for < 2^31 rows (~2.7e11 elements).
        base_row = (i * steps + j) * block_rows
        is_tail = base_row + block_rows > total_rows

        @pl.when(jnp.logical_not(is_tail))
        def _full():
            o_ref[...] += fold(sq)

        @pl.when(is_tail)
        def _tail():
            row_ids = base_row + jax.lax.broadcasted_iota(
                jnp.int32, (block_rows, LANES), 0)
            o_ref[...] += fold(jnp.where(row_ids < total_rows, sq, 0.0))
    else:
        o_ref[...] += fold(sq)


def _num_parallel_slices():
    # 2-way "parallel" split is only useful where a chip exposes 2 TensorCores
    # (v7x); on single-TC v5e/v6e it is just a serial loop plus a wasted block.
    try:
        kind = jax.devices()[0].device_kind.lower()
    except Exception:
        return 1
    return 2 if "7" in kind else 1


def _largest_divisor_leq(n, cap):
    for d in range(min(cap, n), 0, -1):
        if n % d == 0:
            return d
    return 1


def mse_loss(prediction, targets):
    """Mean squared error over all elements (== nn.MSELoss()(pred.view(-1), tgt.view(-1)))."""
    assert prediction.shape == targets.shape
    p = prediction.reshape(-1)
    t = targets.reshape(-1)
    n = p.shape[0]

    # Pad only when numel is not a multiple of one lane row (128); zero pads on both
    # operands contribute 0 to the squared-error sum. Typical NN shapes never hit
    # this branch, so there is no extra HBM pass. Rows past the logical end (ragged
    # last block) are masked in-kernel instead of padding to a full (8,128) tile.
    n_pad = pl.cdiv(n, LANES) * LANES
    if n_pad != n:
        p = jnp.pad(p, (0, n_pad - n))
        t = jnp.pad(t, (0, n_pad - n))

    rows = n_pad // LANES
    block_rows = min(TARGET_BLOCK_ROWS, rows)
    p2 = p.reshape(rows, LANES)
    t2 = t.reshape(rows, LANES)

    n_blocks = pl.cdiv(rows, block_rows)
    num_slices = min(_num_parallel_slices(), n_blocks)
    steps = pl.cdiv(n_blocks, num_slices)

    # Wide accumulator so per-step partials are independent vreg adds.
    acc_rows = _largest_divisor_leq(block_rows, MAX_ACC_ROWS)

    # Masking only needed if the last block is ragged or the last slice carries
    # a clamped duplicate block (trace-time Python decision).
    needs_mask = (rows % block_rows != 0) or (num_slices * steps > n_blocks)

    def in_map(i, j):
        # Clamp so a duplicated block on the last slice never reads out of range;
        # its contribution is zeroed by the in-kernel tail mask.
        return (jnp.minimum(i * steps + j, n_blocks - 1), 0)

    out = pl.pallas_call(
        functools.partial(
            _mse_kernel,
            block_rows=block_rows,
            acc_rows=acc_rows,
            steps=steps,
            total_rows=rows,
            needs_mask=needs_mask,
        ),
        out_shape=jax.ShapeDtypeStruct((num_slices, acc_rows, LANES), jnp.float32),
        grid_spec=pltpu.PrefetchScalarGridSpec(
            num_scalar_prefetch=0,
            grid=(num_slices, steps),
            in_specs=[
                pl.BlockSpec((block_rows, LANES), in_map),
                pl.BlockSpec((block_rows, LANES), in_map),
            ],
            # Leading dim squeezed (None): kernel sees an (acc_rows, 128) accumulator
            # block, resident in VMEM across the "arbitrary" j axis, one per slice.
            out_specs=pl.BlockSpec((None, acc_rows, LANES), lambda i, j: (i, 0, 0)),
        ),
        compiler_params=pltpu.CompilerParams(
            dimension_semantics=("parallel", "arbitrary"),
            vmem_limit_bytes=48 * 1024 * 1024,
        ),
    )(p2, t2)

    # Single cross-lane/sublane reduction of the small partial slab, then mean.
    loss = jnp.sum(out) * (1.0 / n)
    return loss.astype(prediction.dtype)


if __name__ == "__main__":
    key = jax.random.PRNGKey(0)
    k1, k2 = jax.random.split(key)

    # Small NCHW-like shapes consistent with the module's usage (flattened inside).
    prediction = jax.random.normal(k1, (2, 4, 16, 16), dtype=jnp.float32)
    targets = jax.random.normal(k2, (2, 4, 16, 16), dtype=jnp.float32)

    loss = mse_loss(prediction, targets)
    jax.block_until_ready(loss)

    ref = jnp.mean((prediction - targets) ** 2)
    assert jnp.allclose(loss, ref, rtol=1e-5, atol=1e-6), (loss, ref)

    # Ragged (numel % 128 != 0) fallback path check.
    pr = jax.random.normal(k1, (3, 5, 7), dtype=jnp.float32)
    tg = jax.random.normal(k2, (3, 5, 7), dtype=jnp.float32)
    loss_r = mse_loss(pr, tg)
    jax.block_until_ready(loss_r)
    ref_r = jnp.mean((pr - tg) ** 2)
    assert jnp.allclose(loss_r, ref_r, rtol=1e-5, atol=1e-6), (loss_r, ref_r)

    print("KERNEL_OK")
</pallas_src>

<mosaic_0001>
module attributes {stable_mosaic.version = 11 : i64} {
  func.func @_mse_kernel(%arg0: i32, %arg1: i32, %arg2: memref<16x128xf32, #tpu.memory_space<vmem>>, %arg3: memref<16x128xf32, #tpu.memory_space<vmem>>, %arg4: memref<1x16x128xf32, #tpu.memory_space<vmem>>) attributes {dimension_semantics = [#tpu.dimension_semantics<parallel>, #tpu.dimension_semantics<arbitrary>], iteration_bounds = array<i64: 1, 1>, scalar_prefetch = 0 : i64, scratch_operands = 0 : i64, tpu.core_type = #tpu.core_type<tc>, window_params = [{transform_indices = @transform_0, window_bounds = array<i64: 16, 128>}, {transform_indices = @transform_1, window_bounds = array<i64: 16, 128>}, {transform_indices = @transform_2, window_bounds = array<i64: 1, 16, 128>}]} {
    %c0_i32 = arith.constant 0 : i32
    %0 = arith.cmpi eq, %arg1, %c0_i32 : i32
    %1 = arith.extui %0 : i1 to i32
    %c0_i32_0 = arith.constant 0 : i32
    %2 = arith.cmpi ne, %1, %c0_i32_0 : i32
    scf.if %2 {
      %cst_10 = arith.constant 0.000000e+00 : f32
      %15 = vector.broadcast %cst_10 : f32 to vector<16x128xf32>
      %c0_11 = arith.constant 0 : index
      %c0_12 = arith.constant 0 : index
      %c0_13 = arith.constant 0 : index
      %16 = vector.load %arg4[%c0_11, %c0_12, %c0_13] : memref<1x16x128xf32, #tpu.memory_space<vmem>>, vector<1x16x128xf32>
      %17 = vector.shape_cast %16 : vector<1x16x128xf32> to vector<16x128xf32>
      %18 = vector.shape_cast %15 : vector<16x128xf32> to vector<1x16x128xf32>
      tpu.vector_store %arg4[%c0_11, %c0_12, %c0_13], %18 {strides = array<i32>} : memref<1x16x128xf32, #tpu.memory_space<vmem>>, vector<1x16x128xf32>,
    } else {
    }
    %c0 = arith.constant 0 : index
    %c0_1 = arith.constant 0 : index
    %3 = vector.load %arg2[%c0, %c0_1] : memref<16x128xf32, #tpu.memory_space<vmem>>, vector<16x128xf32>
    %c0_2 = arith.constant 0 : index
    %c0_3 = arith.constant 0 : index
    %4 = vector.load %arg3[%c0_2, %c0_3] : memref<16x128xf32, #tpu.memory_space<vmem>>, vector<16x128xf32>
    %5 = arith.subf %3, %4 : vector<16x128xf32>
    %6 = arith.mulf %5, %5 : vector<16x128xf32>
    %c0_4 = arith.constant 0 : index
    %c0_5 = arith.constant 0 : index
    %c0_6 = arith.constant 0 : index
    %7 = vector.load %arg4[%c0_4, %c0_5, %c0_6] : memref<1x16x128xf32, #tpu.memory_space<vmem>>, vector<1x16x128xf32>
    %8 = vector.shape_cast %7 : vector<1x16x128xf32> to vector<16x128xf32>
    %9 = vector.shape_cast %6 : vector<16x128xf32> to vector<1x16x128xf32>
    %cst = arith.constant dense<0.000000e+00> : vector<16x128xf32>
    %10 = vector.multi_reduction <add>, %9, %cst [0] : vector<1x16x128xf32> to vector<16x128xf32>
    %11 = arith.addf %8, %10 : vector<16x128xf32>
    %c0_7 = arith.constant 0 : index
    %c0_8 = arith.constant 0 : index
    %c0_9 = arith.constant 0 : index
    %12 = vector.load %arg4[%c0_7, %c0_8, %c0_9] : memref<1x16x128xf32, #tpu.memory_space<vmem>>, vector<1x16x128xf32>
    %13 = vector.shape_cast %12 : vector<1x16x128xf32> to vector<16x128xf32>
    %14 = vector.shape_cast %11 : vector<16x128xf32> to vector<1x16x128xf32>
    tpu.vector_store %arg4[%c0_7, %c0_8, %c0_9], %14 {strides = array<i32>} : memref<1x16x128xf32, #tpu.memory_space<vmem>>, vector<1x16x128xf32>,
    return
  }
  func.func @transform_0(%arg0: i32, %arg1: i32) -> (i32, i32) {
    %c1_i32 = arith.constant 1 : i32
    %0 = arith.muli %arg0, %c1_i32 : i32
    %1 = arith.addi %0, %arg1 : i32
    %c0_i32 = arith.constant 0 : i32
    %2 = arith.minsi %1, %c0_i32 : i32
    %c0_i32_0 = arith.constant 0 : i32
    %c0_i32_1 = arith.constant 0 : i32
    return %2, %c0_i32_0 : i32, i32
  }
  func.func @transform_1(%arg0: i32, %arg1: i32) -> (i32, i32) {
    %c1_i32 = arith.constant 1 : i32
    %0 = arith.muli %arg0, %c1_i32 : i32
    %1 = arith.addi %0, %arg1 : i32
    %c0_i32 = arith.constant 0 : i32
    %2 = arith.minsi %1, %c0_i32 : i32
    %c0_i32_0 = arith.constant 0 : i32
    %c0_i32_1 = arith.constant 0 : i32
    return %2, %c0_i32_0 : i32, i32
  }
  func.func @transform_2(%arg0: i32, %arg1: i32) -> (i32, i32, i32) {
    %c0_i32 = arith.constant 0 : i32
    %c0_i32_0 = arith.constant 0 : i32
    %c0_i32_1 = arith.constant 0 : i32
    return %arg0, %c0_i32, %c0_i32_0 : i32, i32, i32
  }
}

</mosaic_0001>

<llo_original>
// kernel: tpu_custom_call.1
$region0: #{tpu_custom_call.1}
  #allocation0 [shape = 'u32[]', space=smem, size = 0x4, offset = 0x4, fixed_abs, tag = 'smem constant byte address 0x4 - core index']
  #allocation1 [shape = 'u32[144,128]{1,0:T(1,128)}', space=vmem, size = 0x12000, scoped, tag = 'internal scratch']
  %s0 = inlined_call_operand.hbm [shape: f32[16,128], index: 0, kind: input, shape index: {}]
  %s1 = inlined_call_operand.hbm [shape: f32[16,128], index: 1, kind: input, shape index: {}]
  %s2 = inlined_call_operand.hbm [shape: f32[1,16,128], index: 2, kind: output, shape index: {}]
  %s3 = sld [smem:[#allocation0]]
  $region30: #{tpu_custom_call.1} parent=0
    _
  %s5 = ssub.s32 1, %s3
  %s6 = scalar_select 0, %s5, %s3
  $region1: #{tpu_custom_call.1} parent=0
    #allocation2 [shape = 'u8[8192]{0}', space=vmem, size = 0x2000, scoped, tag = 'input window, operand 0, single buffered']
    #allocation3 [shape = 's32[1]{0}', space=sflag, size = 0x4, scoped, tag = 'scoped memory for tpu_custom_call.1']
    #allocation4 [shape = 's32[1]{0}', space=sflag, size = 0x4, scoped, tag = 'scoped memory for tpu_custom_call.1']
    #allocation5 [shape = 'u8[8192]{0}', space=vmem, size = 0x2000, scoped, tag = 'input window, operand 1, single buffered']
    #allocation6 [shape = 's32[1]{0}', space=sflag, size = 0x4, scoped, tag = 'scoped memory for tpu_custom_call.1']
    #allocation7 [shape = 'u8[8192]{0}', space=vmem, size = 0x2000, scoped, tag = 'output window, operand 0, single buffered']
    %7 = vsyncpa [#allocation3], 0
    %8 = vsyncpa [#allocation6], 0
    %9 = vsyncpa [#allocation4], 0
    // Predicated region
    $region2: #{tpu_custom_call.1} parent=1 // pred_check
      _
    $region3: #{tpu_custom_call.1} parent=1 // pred_check_branch
      %11 = sbr.rel (0) target = $region5
    $region4: #{tpu_custom_call.1} parent=1 // pred_region
      %s12 = sadd.s32 0, 0
      %p13 = scmp.lt.s32.totalorder %s12, 0
      %s14 = scalar_select %p13, %s12, 0
      %s15 = smul.u32 2, %s14
      %s17 = ssub.s32 256, 256
      %18 = vsyncadd [#allocation3], %s17
      %s19 = smul.addr %s15, 128
      %s20 = scalar_lea.hbm %s0, %s19
      %s21 = sshll.u32 [#allocation2], 4
      %s22 = int_to_ptr.vmem [resolvable:$true] %s21
      %27 = dma.hbm_to_vmem [thread:$0]  %s20, 256, %s22, [#allocation3], 128, 128, 8
    $region5: #{tpu_custom_call.1} parent=1 // pred_fallthru
      _
    // Predicated region
    $region6: #{tpu_custom_call.1} parent=1 // pred_check
      _
    $region7: #{tpu_custom_call.1} parent=1 // pred_check_branch
      %29 = sbr.rel (0) target = $region9
    $region8: #{tpu_custom_call.1} parent=1 // pred_region
      %s30 = sadd.s32 0, 0
      %p31 = scmp.lt.s32.totalorder %s30, 0
      %s32 = scalar_select %p31, %s30, 0
      %s33 = smul.u32 2, %s32
      %s35 = ssub.s32 256, 256
      %36 = vsyncadd [#allocation6], %s35
      %s37 = smul.addr %s33, 128
      %s38 = scalar_lea.hbm %s1, %s37
      %s39 = sshll.u32 [#allocation5], 4
      %s40 = int_to_ptr.vmem [resolvable:$true] %s39
      %45 = dma.hbm_to_vmem [thread:$0]  %s38, 256, %s40, [#allocation6], 128, 128, 8
    $region9: #{tpu_custom_call.1} parent=1 // pred_fallthru
      _
    // Predicated region
    $region10: #{tpu_custom_call.1} parent=1 // pred_check
      _
    $region11: #{tpu_custom_call.1} parent=1 // pred_check_branch
      %47 = sbr.rel (0) target = $region13
    $region12: #{tpu_custom_call.1} parent=1 // pred_region
      %48 = dma.done [#allocation3], 256
    $region13: #{tpu_custom_call.1} parent=1 // pred_fallthru
      _
    // Predicated region
    $region14: #{tpu_custom_call.1} parent=1 // pred_check
      _
    $region15: #{tpu_custom_call.1} parent=1 // pred_check_branch
      %50 = sbr.rel (0) target = $region17
    $region16: #{tpu_custom_call.1} parent=1 // pred_region
      %51 = dma.done [#allocation6], 256
    $region17: #{tpu_custom_call.1} parent=1 // pred_fallthru
      _
    %s52 = sadd.s32 0, 0
    %p53 = scmp.lt.s32.totalorder %s52, 0
    %s54 = scalar_select %p53, %s52, 0
    %s55 = smul.u32 2, %s54
    %s56 = sadd.s32 0, 0
    %p57 = scmp.lt.s32.totalorder %s56, 0
    %s58 = scalar_select %p57, %s56, 0
    %s59 = smul.u32 2, %s58
    %p60 = scmp.eq.s32.totalorder 0, 0
    // Predicated region
    $region18: #{tpu_custom_call.1} parent=1 // pred_check
      %p61 = pneg %p60
    $region19: #{tpu_custom_call.1} parent=1 // pred_check_branch
      %63 = sbr.rel (%p61) target = $region21
    $region20: #{tpu_custom_call.1} parent=1 // pred_region
      %64 = vst [vmem:[#allocation7] sm:$0xff] 0.0
      %65 = vst [vmem:[#allocation7 + $0x8] sm:$0xff] 0.0
    $region21: #{tpu_custom_call.1} parent=1 // pred_fallthru
      _
    %v66 = vld [vmem:[#allocation2] sm:$0xff]
    %v67 = vld [vmem:[#allocation2 + $0x8] sm:$0xff]
    %v68 = vld [vmem:[#allocation5] sm:$0xff]
    %v69 = vld [vmem:[#allocation5 + $0x8] sm:$0xff]
    %v70 = vsub.f32 %v66, %v68
    %v71 = vsub.f32 %v67, %v69
    %v72 = vmul.f32 %v70, %v70
    %v73 = vmul.f32 %v71, %v71
    %v74 = vld [vmem:[#allocation7] sm:$0xff]
    %v75 = vld [vmem:[#allocation7 + $0x8] sm:$0xff]
    %v76 = vadd.f32 %v72, 0.0
    %v77 = vadd.f32 %v73, 0.0
    %v78 = vadd.f32 %v74, %v76
    %v79 = vadd.f32 %v75, %v77
    %80 = vst [vmem:[#allocation7] sm:$0xff] %v78
    %81 = vst [vmem:[#allocation7 + $0x8] sm:$0xff] %v79
    // Predicated region
    $region22: #{tpu_custom_call.1} parent=1 // pred_check
      _
    $region23: #{tpu_custom_call.1} parent=1 // pred_check_branch
      %83 = sbr.rel (0) target = $region25
    $region24: #{tpu_custom_call.1} parent=1 // pred_region
      %s85 = ssub.s32 256, 256
      %86 = vsyncadd [#allocation4], %s85
      %s87 = sshll.u32 [#allocation7], 4
      %s88 = int_to_ptr.vmem [resolvable:$true] %s87
      %93 = dma.vmem_to_hbm [thread:$0]  %s88, 256, %s2, [#allocation4], 128, 128, 8
    $region25: #{tpu_custom_call.1} parent=1 // pred_fallthru
      _
    // Predicated region
    $region26: #{tpu_custom_call.1} parent=1 // pred_check
      _
    $region27: #{tpu_custom_call.1} parent=1 // pred_check_branch
      %95 = sbr.rel (0) target = $region29
    $region28: #{tpu_custom_call.1} parent=1 // pred_region
      %96 = dma.done [#allocation4], 256
    $region29: #{tpu_custom_call.1} parent=1 // pred_fallthru
      _
    %97 = vsyncpa [#allocation3], 1
    %98 = vsyncpa [#allocation6], 1
    %99 = vsyncpa [#allocation4], 1

</llo_original>
